<compile_context>
chip_gen: v6e
topology: v6e:2x2x1
jax: 0.10.0
libtpu: 0.0.40
codegen_flags: <defaults>
</compile_context>

<pallas_src>
import functools
import math

import jax
import jax.numpy as jnp
from jax.experimental import pallas as pl
from jax.experimental.pallas import tpu as pltpu


def _lstm_seq_kernel(x_ref, wih_ref, whh_ref, b_ref, out_ref, *, sig, seq_len,
                     hidden):
    """Single invocation; everything VMEM-resident.

    x_ref   : (T*B, E)   bf16   time-major inputs, flattened over (T, B)
    wih_ref : (E, 4H)    bf16   W_ih^T
    whh_ref : (H, 4H)    bf16   W_hh^T
    b_ref   : (1, 4H)    f32    b_ih + b_hh
    out_ref : (B, T*H)   f32    LSTM output, time-concatenated along lanes
                                (sigmoid applied if sig); lane-dense store.
    """
    T = seq_len
    H = hidden
    B = out_ref.shape[0]

    # ---- one batched GEMM for the input projection (hoisted out of the loop) ----
    # (T*B, E) @ (E, 4H) + bias  ->  (T*B, 4H) in f32.
    gx = (
        jnp.dot(x_ref[...], wih_ref[...], preferred_element_type=jnp.float32)
        + b_ref[...]
    )

    whh = whh_ref[...]  # (H, 4H) bf16, resident across all steps

    h = jnp.zeros((B, H), jnp.float32)
    c = jnp.zeros((B, H), jnp.float32)
    ys = []

    # ---- serial recurrence: one small (B,H) x (H,4H) matmul per step ----
    for t in range(T):  # T small & static -> fully unrolled, static slices
        gates = gx[t * B:(t + 1) * B, :] + jnp.dot(
            h.astype(whh.dtype), whh, preferred_element_type=jnp.float32
        )  # (B, 4H) f32

        # sigmoid over the full gate vreg; tanh only on the cell-candidate slice.
        sig_all = jax.nn.sigmoid(gates)
        i_g = sig_all[:, 0 * H:1 * H]          # input gate
        f_g = sig_all[:, 1 * H:2 * H]          # forget gate
        g_g = jnp.tanh(gates[:, 2 * H:3 * H])  # cell candidate
        o_g = sig_all[:, 3 * H:4 * H]          # output gate

        c = f_g * c + i_g * g_g
        h = o_g * jnp.tanh(c)
        ys.append(h)

    # Single lane-dense (B, T*H) result; optional sigmoid applied once.
    out = jnp.concatenate(ys, axis=-1)
    if sig:
        out = jax.nn.sigmoid(out)
    out_ref[...] = out.astype(out_ref.dtype)


def prepare_lstm_params(w_ih, w_hh, b_ih, b_hh):
    """One-time parameter preparation (hoisted out of the per-call path).

    w_ih: (4H, E), w_hh: (4H, H), b_ih/b_hh: (4H,)  -- PyTorch layout.
    """
    four_h = w_ih.shape[0]
    return {
        "wih_t": jnp.transpose(w_ih).astype(jnp.bfloat16),              # (E, 4H)
        "whh_t": jnp.transpose(w_hh).astype(jnp.bfloat16),              # (H, 4H)
        "bias": (b_ih + b_hh).astype(jnp.float32).reshape(1, four_h),   # (1, 4H)
    }


def lstm_pallas(x_btE, prep, *, sig):
    """x_btE: (B, T, E) batch_first input. Returns LSTM output (B, T, H)
    (with sigmoid applied if sig). Matches torch.nn.LSTM(batch_first=True)."""
    B, T, E = x_btE.shape
    H = prep["whh_t"].shape[0]

    # Time-major, flattened over (T, B); reshape after transpose is metadata-only.
    x_flat = (
        jnp.transpose(x_btE, (1, 0, 2)).reshape(T * B, E).astype(jnp.bfloat16)
    )

    out_bth = pl.pallas_call(
        functools.partial(_lstm_seq_kernel, sig=sig, seq_len=T, hidden=H),
        out_shape=jax.ShapeDtypeStruct((B, T * H), jnp.float32),
        in_specs=[
            pl.BlockSpec(memory_space=pltpu.MemorySpace.VMEM),  # x (T*B, E)
            pl.BlockSpec(memory_space=pltpu.MemorySpace.VMEM),  # W_ih^T
            pl.BlockSpec(memory_space=pltpu.MemorySpace.VMEM),  # W_hh^T
            pl.BlockSpec(memory_space=pltpu.MemorySpace.VMEM),  # bias
        ],
        out_specs=pl.BlockSpec(memory_space=pltpu.MemorySpace.VMEM),
    )(x_flat, prep["wih_t"], prep["whh_t"], prep["bias"])

    return out_bth.reshape(B, T, H)  # metadata-only reshape


def lstm_reference(x_btE, prep, *, sig):
    """Pure-JAX reference (same bf16 matmul / f32 elementwise precision)."""
    B, T, E = x_btE.shape
    H = prep["whh_t"].shape[0]
    wih, whh, bias = prep["wih_t"], prep["whh_t"], prep["bias"]
    x_tbe = jnp.transpose(x_btE, (1, 0, 2)).astype(jnp.bfloat16)

    def step(carry, x_t):
        h, c = carry
        gates = (
            jnp.dot(x_t, wih, preferred_element_type=jnp.float32)
            + jnp.dot(h.astype(jnp.bfloat16), whh, preferred_element_type=jnp.float32)
            + bias
        )
        i_g = jax.nn.sigmoid(gates[:, 0 * H:1 * H])
        f_g = jax.nn.sigmoid(gates[:, 1 * H:2 * H])
        g_g = jnp.tanh(gates[:, 2 * H:3 * H])
        o_g = jax.nn.sigmoid(gates[:, 3 * H:4 * H])
        c = f_g * c + i_g * g_g
        h = o_g * jnp.tanh(c)
        y = jax.nn.sigmoid(h) if sig else h
        return (h, c), y

    init = (jnp.zeros((B, H), jnp.float32), jnp.zeros((B, H), jnp.float32))
    _, ys = jax.lax.scan(step, init, x_tbe)
    return jnp.transpose(ys, (1, 0, 2))


def xavier_uniform_like_torch(key, shape):
    """torch.nn.init.xavier_uniform_ on a tensor of `shape` (ndim >= 2)."""
    num_input_fmaps = shape[1]
    num_output_fmaps = shape[0]
    receptive = 1
    for s in shape[2:]:
        receptive *= s
    fan_in = num_input_fmaps * receptive
    fan_out = num_output_fmaps * receptive
    a = math.sqrt(6.0 / float(fan_in + fan_out))
    return jax.random.uniform(key, shape, jnp.float32, minval=-a, maxval=a)


def lstm_model_forward(x, params, *, sig):
    """Full forward of the PyTorch module. Returns (out, lstm_out)."""
    prep = prepare_lstm_params(
        params["w_ih"], params["w_hh"], params["b_ih"], params["b_hh"]
    )
    lstm_out = lstm_pallas(x, prep, sig=sig)
    # torch.nn.init.xavier_uniform_(out) overwrites the output in-place with
    # fresh uniform samples; reproduce that (deterministically) here.
    # TODO(synk): jax.random will not bit-match torch's RNG stream (distribution matches).
    out = xavier_uniform_like_torch(params["xavier_key"], lstm_out.shape)
    return out, lstm_out


if __name__ == "__main__":
    B, T, E, H = 2, 8, 16, 32
    sig = True

    root = jax.random.PRNGKey(0)
    k_x, k_wih, k_whh, k_bih, k_bhh, k_out = jax.random.split(root, 6)

    # Deterministic parameter init (mirrors the module's __init__):
    #  - weight_ih_l0 gets xavier_uniform_  (fan_in=E, fan_out=4H)
    #  - everything else keeps PyTorch's default LSTM init U(-1/sqrt(H), 1/sqrt(H))
    a_ih = math.sqrt(6.0 / float(E + 4 * H))
    k_lstm = 1.0 / math.sqrt(H)
    params = {
        "w_ih": jax.random.uniform(k_wih, (4 * H, E), jnp.float32, -a_ih, a_ih),
        "w_hh": jax.random.uniform(k_whh, (4 * H, H), jnp.float32, -k_lstm, k_lstm),
        "b_ih": jax.random.uniform(k_bih, (4 * H,), jnp.float32, -k_lstm, k_lstm),
        "b_hh": jax.random.uniform(k_bhh, (4 * H,), jnp.float32, -k_lstm, k_lstm),
        "xavier_key": k_out,
    }

    x = jax.random.normal(k_x, (B, T, E), jnp.float32)

    out, lstm_out = lstm_model_forward(x, params, sig=sig)
    jax.block_until_ready(out)
    jax.block_until_ready(lstm_out)

    assert out.shape == (B, T, H)
    assert lstm_out.shape == (B, T, H)

    # Correctness check of the Pallas recurrence against a pure-JAX reference.
    prep = prepare_lstm_params(
        params["w_ih"], params["w_hh"], params["b_ih"], params["b_hh"]
    )
    ref = jax.block_until_ready(lstm_reference(x, prep, sig=sig))
    assert jnp.allclose(lstm_out, ref, atol=2e-2, rtol=2e-2), (
        "Pallas LSTM output mismatch vs reference"
    )

    print("KERNEL_OK")
</pallas_src>

<mosaic_0001>
module attributes {stable_mosaic.version = 11 : i64} {
  func.func @_lstm_seq_kernel(%arg0: memref<16x16xbf16, #tpu.memory_space<vmem>>, %arg1: memref<16x128xbf16, #tpu.memory_space<vmem>>, %arg2: memref<32x128xbf16, #tpu.memory_space<vmem>>, %arg3: memref<1x128xf32, #tpu.memory_space<vmem>>, %arg4: memref<2x256xf32, #tpu.memory_space<vmem>>) attributes {dimension_semantics = [], scalar_prefetch = 0 : i64, scratch_operands = 0 : i64, tpu.core_type = #tpu.core_type<tc>} {
    %c0 = arith.constant 0 : index
    %c0_0 = arith.constant 0 : index
    %0 = vector.load %arg0[%c0, %c0_0] : memref<16x16xbf16, #tpu.memory_space<vmem>>, vector<16x16xbf16>
    %c0_1 = arith.constant 0 : index
    %c0_2 = arith.constant 0 : index
    %1 = vector.load %arg1[%c0_1, %c0_2] : memref<16x128xbf16, #tpu.memory_space<vmem>>, vector<16x128xbf16>
    %cst = arith.constant dense<0.000000e+00> : vector<16x128xf32>
    %2 = tpu.matmul %0, %1, %cst {dimension_numbers = #tpu.dot_dimension_numbers<[1], [0], [0], [1], [0, 0, 1, 1], [], []>} : vector<16x16xbf16>, vector<16x128xbf16>, vector<16x128xf32> -> vector<16x128xf32>
    %c0_3 = arith.constant 0 : index
    %c0_4 = arith.constant 0 : index
    %3 = vector.load %arg3[%c0_3, %c0_4] : memref<1x128xf32, #tpu.memory_space<vmem>>, vector<1x128xf32>
    %4 = vector.broadcast %3 : vector<1x128xf32> to vector<16x128xf32>
    %5 = arith.addf %2, %4 : vector<16x128xf32>
    %c0_5 = arith.constant 0 : index
    %c0_6 = arith.constant 0 : index
    %6 = vector.load %arg2[%c0_5, %c0_6] : memref<32x128xbf16, #tpu.memory_space<vmem>>, vector<32x128xbf16>
    %cst_7 = arith.constant 0.000000e+00 : f32
    %7 = vector.broadcast %cst_7 : f32 to vector<2x32xf32>
    %cst_8 = arith.constant 0.000000e+00 : f32
    %8 = vector.broadcast %cst_8 : f32 to vector<2x32xf32>
    %9 = vector.extract_strided_slice %5 {offsets = [0, 0], sizes = [2, 128], strides = [1, 1]} : vector<16x128xf32> to vector<2x128xf32>
    %10 = arith.truncf %7 : vector<2x32xf32> to vector<2x32xbf16>
    %cst_9 = arith.constant dense<0.000000e+00> : vector<2x128xf32>
    %11 = tpu.matmul %10, %6, %cst_9 {dimension_numbers = #tpu.dot_dimension_numbers<[1], [0], [0], [1], [0, 0, 1, 1], [], []>} : vector<2x32xbf16>, vector<32x128xbf16>, vector<2x128xf32> -> vector<2x128xf32>
    %12 = arith.addf %9, %11 : vector<2x128xf32>
    %13 = arith.negf %12 : vector<2x128xf32>
    %14 = math.exp %13 : vector<2x128xf32>
    %cst_10 = arith.constant 1.000000e+00 : f32
    %15 = vector.broadcast %cst_10 : f32 to vector<2x128xf32>
    %16 = arith.addf %15, %14 : vector<2x128xf32>
    %17 = arith.divf %15, %16 : vector<2x128xf32>
    %18 = vector.extract_strided_slice %17 {offsets = [0, 0], sizes = [2, 32], strides = [1, 1]} : vector<2x128xf32> to vector<2x32xf32>
    %19 = vector.extract_strided_slice %17 {offsets = [0, 32], sizes = [2, 32], strides = [1, 1]} : vector<2x128xf32> to vector<2x32xf32>
    %20 = vector.extract_strided_slice %12 {offsets = [0, 64], sizes = [2, 32], strides = [1, 1]} : vector<2x128xf32> to vector<2x32xf32>
    %21 = math.tanh %20 : vector<2x32xf32>
    %22 = vector.extract_strided_slice %17 {offsets = [0, 96], sizes = [2, 32], strides = [1, 1]} : vector<2x128xf32> to vector<2x32xf32>
    %23 = arith.mulf %19, %8 : vector<2x32xf32>
    %24 = arith.mulf %18, %21 : vector<2x32xf32>
    %25 = arith.addf %23, %24 : vector<2x32xf32>
    %26 = math.tanh %25 : vector<2x32xf32>
    %27 = arith.mulf %22, %26 : vector<2x32xf32>
    %28 = vector.extract_strided_slice %5 {offsets = [2, 0], sizes = [2, 128], strides = [1, 1]} : vector<16x128xf32> to vector<2x128xf32>
    %29 = arith.truncf %27 : vector<2x32xf32> to vector<2x32xbf16>
    %cst_11 = arith.constant dense<0.000000e+00> : vector<2x128xf32>
    %30 = tpu.matmul %29, %6, %cst_11 {dimension_numbers = #tpu.dot_dimension_numbers<[1], [0], [0], [1], [0, 0, 1, 1], [], []>} : vector<2x32xbf16>, vector<32x128xbf16>, vector<2x128xf32> -> vector<2x128xf32>
    %31 = arith.addf %28, %30 : vector<2x128xf32>
    %32 = arith.negf %31 : vector<2x128xf32>
    %33 = math.exp %32 : vector<2x128xf32>
    %cst_12 = arith.constant 1.000000e+00 : f32
    %34 = vector.broadcast %cst_12 : f32 to vector<2x128xf32>
    %35 = arith.addf %34, %33 : vector<2x128xf32>
    %36 = arith.divf %34, %35 : vector<2x128xf32>
    %37 = vector.extract_strided_slice %36 {offsets = [0, 0], sizes = [2, 32], strides = [1, 1]} : vector<2x128xf32> to vector<2x32xf32>
    %38 = vector.extract_strided_slice %36 {offsets = [0, 32], sizes = [2, 32], strides = [1, 1]} : vector<2x128xf32> to vector<2x32xf32>
    %39 = vector.extract_strided_slice %31 {offsets = [0, 64], sizes = [2, 32], strides = [1, 1]} : vector<2x128xf32> to vector<2x32xf32>
    %40 = math.tanh %39 : vector<2x32xf32>
    %41 = vector.extract_strided_slice %36 {offsets = [0, 96], sizes = [2, 32], strides = [1, 1]} : vector<2x128xf32> to vector<2x32xf32>
    %42 = arith.mulf %38, %25 : vector<2x32xf32>
    %43 = arith.mulf %37, %40 : vector<2x32xf32>
    %44 = arith.addf %42, %43 : vector<2x32xf32>
    %45 = math.tanh %44 : vector<2x32xf32>
    %46 = arith.mulf %41, %45 : vector<2x32xf32>
    %47 = vector.extract_strided_slice %5 {offsets = [4, 0], sizes = [2, 128], strides = [1, 1]} : vector<16x128xf32> to vector<2x128xf32>
    %48 = arith.truncf %46 : vector<2x32xf32> to vector<2x32xbf16>
    %cst_13 = arith.constant dense<0.000000e+00> : vector<2x128xf32>
    %49 = tpu.matmul %48, %6, %cst_13 {dimension_numbers = #tpu.dot_dimension_numbers<[1], [0], [0], [1], [0, 0, 1, 1], [], []>} : vector<2x32xbf16>, vector<32x128xbf16>, vector<2x128xf32> -> vector<2x128xf32>
    %50 = arith.addf %47, %49 : vector<2x128xf32>
    %51 = arith.negf %50 : vector<2x128xf32>
    %52 = math.exp %51 : vector<2x128xf32>
    %cst_14 = arith.constant 1.000000e+00 : f32
    %53 = vector.broadcast %cst_14 : f32 to vector<2x128xf32>
    %54 = arith.addf %53, %52 : vector<2x128xf32>
    %55 = arith.divf %53, %54 : vector<2x128xf32>
    %56 = vector.extract_strided_slice %55 {offsets = [0, 0], sizes = [2, 32], strides = [1, 1]} : vector<2x128xf32> to vector<2x32xf32>
    %57 = vector.extract_strided_slice %55 {offsets = [0, 32], sizes = [2, 32], strides = [1, 1]} : vector<2x128xf32> to vector<2x32xf32>
    %58 = vector.extract_strided_slice %50 {offsets = [0, 64], sizes = [2, 32], strides = [1, 1]} : vector<2x128xf32> to vector<2x32xf32>
    %59 = math.tanh %58 : vector<2x32xf32>
    %60 = vector.extract_strided_slice %55 {offsets = [0, 96], sizes = [2, 32], strides = [1, 1]} : vector<2x128xf32> to vector<2x32xf32>
    %61 = arith.mulf %57, %44 : vector<2x32xf32>
    %62 = arith.mulf %56, %59 : vector<2x32xf32>
    %63 = arith.addf %61, %62 : vector<2x32xf32>
    %64 = math.tanh %63 : vector<2x32xf32>
    %65 = arith.mulf %60, %64 : vector<2x32xf32>
    %66 = vector.extract_strided_slice %5 {offsets = [6, 0], sizes = [2, 128], strides = [1, 1]} : vector<16x128xf32> to vector<2x128xf32>
    %67 = arith.truncf %65 : vector<2x32xf32> to vector<2x32xbf16>
    %cst_15 = arith.constant dense<0.000000e+00> : vector<2x128xf32>
    %68 = tpu.matmul %67, %6, %cst_15 {dimension_numbers = #tpu.dot_dimension_numbers<[1], [0], [0], [1], [0, 0, 1, 1], [], []>} : vector<2x32xbf16>, vector<32x128xbf16>, vector<2x128xf32> -> vector<2x128xf32>
    %69 = arith.addf %66, %68 : vector<2x128xf32>
    %70 = arith.negf %69 : vector<2x128xf32>
    %71 = math.exp %70 : vector<2x128xf32>
    %cst_16 = arith.constant 1.000000e+00 : f32
    %72 = vector.broadcast %cst_16 : f32 to vector<2x128xf32>
    %73 = arith.addf %72, %71 : vector<2x128xf32>
    %74 = arith.divf %72, %73 : vector<2x128xf32>
    %75 = vector.extract_strided_slice %74 {offsets = [0, 0], sizes = [2, 32], strides = [1, 1]} : vector<2x128xf32> to vector<2x32xf32>
    %76 = vector.extract_strided_slice %74 {offsets = [0, 32], sizes = [2, 32], strides = [1, 1]} : vector<2x128xf32> to vector<2x32xf32>
    %77 = vector.extract_strided_slice %69 {offsets = [0, 64], sizes = [2, 32], strides = [1, 1]} : vector<2x128xf32> to vector<2x32xf32>
    %78 = math.tanh %77 : vector<2x32xf32>
    %79 = vector.extract_strided_slice %74 {offsets = [0, 96], sizes = [2, 32], strides = [1, 1]} : vector<2x128xf32> to vector<2x32xf32>
    %80 = arith.mulf %76, %63 : vector<2x32xf32>
    %81 = arith.mulf %75, %78 : vector<2x32xf32>
    %82 = arith.addf %80, %81 : vector<2x32xf32>
    %83 = math.tanh %82 : vector<2x32xf32>
    %84 = arith.mulf %79, %83 : vector<2x32xf32>
    %85 = vector.extract_strided_slice %5 {offsets = [8, 0], sizes = [2, 128], strides = [1, 1]} : vector<16x128xf32> to vector<2x128xf32>
    %86 = arith.truncf %84 : vector<2x32xf32> to vector<2x32xbf16>
    %cst_17 = arith.constant dense<0.000000e+00> : vector<2x128xf32>
    %87 = tpu.matmul %86, %6, %cst_17 {dimension_numbers = #tpu.dot_dimension_numbers<[1], [0], [0], [1], [0, 0, 1, 1], [], []>} : vector<2x32xbf16>, vector<32x128xbf16>, vector<2x128xf32> -> vector<2x128xf32>
    %88 = arith.addf %85, %87 : vector<2x128xf32>
    %89 = arith.negf %88 : vector<2x128xf32>
    %90 = math.exp %89 : vector<2x128xf32>
    %cst_18 = arith.constant 1.000000e+00 : f32
    %91 = vector.broadcast %cst_18 : f32 to vector<2x128xf32>
    %92 = arith.addf %91, %90 : vector<2x128xf32>
    %93 = arith.divf %91, %92 : vector<2x128xf32>
    %94 = vector.extract_strided_slice %93 {offsets = [0, 0], sizes = [2, 32], strides = [1, 1]} : vector<2x128xf32> to vector<2x32xf32>
    %95 = vector.extract_strided_slice %93 {offsets = [0, 32], sizes = [2, 32], strides = [1, 1]} : vector<2x128xf32> to vector<2x32xf32>
    %96 = vector.extract_strided_slice %88 {offsets = [0, 64], sizes = [2, 32], strides = [1, 1]} : vector<2x128xf32> to vector<2x32xf32>
    %97 = math.tanh %96 : vector<2x32xf32>
    %98 = vector.extract_strided_slice %93 {offsets = [0, 96], sizes = [2, 32], strides = [1, 1]} : vector<2x128xf32> to vector<2x32xf32>
    %99 = arith.mulf %95, %82 : vector<2x32xf32>
    %100 = arith.mulf %94, %97 : vector<2x32xf32>
    %101 = arith.addf %99, %100 : vector<2x32xf32>
    %102 = math.tanh %101 : vector<2x32xf32>
    %103 = arith.mulf %98, %102 : vector<2x32xf32>
    %104 = vector.extract_strided_slice %5 {offsets = [10, 0], sizes = [2, 128], strides = [1, 1]} : vector<16x128xf32> to vector<2x128xf32>
    %105 = arith.truncf %103 : vector<2x32xf32> to vector<2x32xbf16>
    %cst_19 = arith.constant dense<0.000000e+00> : vector<2x128xf32>
    %106 = tpu.matmul %105, %6, %cst_19 {dimension_numbers = #tpu.dot_dimension_numbers<[1], [0], [0], [1], [0, 0, 1, 1], [], []>} : vector<2x32xbf16>, vector<32x128xbf16>, vector<2x128xf32> -> vector<2x128xf32>
    %107 = arith.addf %104, %106 : vector<2x128xf32>
    %108 = arith.negf %107 : vector<2x128xf32>
    %109 = math.exp %108 : vector<2x128xf32>
    %cst_20 = arith.constant 1.000000e+00 : f32
    %110 = vector.broadcast %cst_20 : f32 to vector<2x128xf32>
    %111 = arith.addf %110, %109 : vector<2x128xf32>
    %112 = arith.divf %110, %111 : vector<2x128xf32>
    %113 = vector.extract_strided_slice %112 {offsets = [0, 0], sizes = [2, 32], strides = [1, 1]} : vector<2x128xf32> to vector<2x32xf32>
    %114 = vector.extract_strided_slice %112 {offsets = [0, 32], sizes = [2, 32], strides = [1, 1]} : vector<2x128xf32> to vector<2x32xf32>
    %115 = vector.extract_strided_slice %107 {offsets = [0, 64], sizes = [2, 32], strides = [1, 1]} : vector<2x128xf32> to vector<2x32xf32>
    %116 = math.tanh %115 : vector<2x32xf32>
    %117 = vector.extract_strided_slice %112 {offsets = [0, 96], sizes = [2, 32], strides = [1, 1]} : vector<2x128xf32> to vector<2x32xf32>
    %118 = arith.mulf %114, %101 : vector<2x32xf32>
    %119 = arith.mulf %113, %116 : vector<2x32xf32>
    %120 = arith.addf %118, %119 : vector<2x32xf32>
    %121 = math.tanh %120 : vector<2x32xf32>
    %122 = arith.mulf %117, %121 : vector<2x32xf32>
    %123 = vector.extract_strided_slice %5 {offsets = [12, 0], sizes = [2, 128], strides = [1, 1]} : vector<16x128xf32> to vector<2x128xf32>
    %124 = arith.truncf %122 : vector<2x32xf32> to vector<2x32xbf16>
    %cst_21 = arith.constant dense<0.000000e+00> : vector<2x128xf32>
    %125 = tpu.matmul %124, %6, %cst_21 {dimension_numbers = #tpu.dot_dimension_numbers<[1], [0], [0], [1], [0, 0, 1, 1], [], []>} : vector<2x32xbf16>, vector<32x128xbf16>, vector<2x128xf32> -> vector<2x128xf32>
    %126 = arith.addf %123, %125 : vector<2x128xf32>
    %127 = arith.negf %126 : vector<2x128xf32>
    %128 = math.exp %127 : vector<2x128xf32>
    %cst_22 = arith.constant 1.000000e+00 : f32
    %129 = vector.broadcast %cst_22 : f32 to vector<2x128xf32>
    %130 = arith.addf %129, %128 : vector<2x128xf32>
    %131 = arith.divf %129, %130 : vector<2x128xf32>
    %132 = vector.extract_strided_slice %131 {offsets = [0, 0], sizes = [2, 32], strides = [1, 1]} : vector<2x128xf32> to vector<2x32xf32>
    %133 = vector.extract_strided_slice %131 {offsets = [0, 32], sizes = [2, 32], strides = [1, 1]} : vector<2x128xf32> to vector<2x32xf32>
    %134 = vector.extract_strided_slice %126 {offsets = [0, 64], sizes = [2, 32], strides = [1, 1]} : vector<2x128xf32> to vector<2x32xf32>
    %135 = math.tanh %134 : vector<2x32xf32>
    %136 = vector.extract_strided_slice %131 {offsets = [0, 96], sizes = [2, 32], strides = [1, 1]} : vector<2x128xf32> to vector<2x32xf32>
    %137 = arith.mulf %133, %120 : vector<2x32xf32>
    %138 = arith.mulf %132, %135 : vector<2x32xf32>
    %139 = arith.addf %137, %138 : vector<2x32xf32>
    %140 = math.tanh %139 : vector<2x32xf32>
    %141 = arith.mulf %136, %140 : vector<2x32xf32>
    %142 = vector.extract_strided_slice %5 {offsets = [14, 0], sizes = [2, 128], strides = [1, 1]} : vector<16x128xf32> to vector<2x128xf32>
    %143 = arith.truncf %141 : vector<2x32xf32> to vector<2x32xbf16>
    %cst_23 = arith.constant dense<0.000000e+00> : vector<2x128xf32>
    %144 = tpu.matmul %143, %6, %cst_23 {dimension_numbers = #tpu.dot_dimension_numbers<[1], [0], [0], [1], [0, 0, 1, 1], [], []>} : vector<2x32xbf16>, vector<32x128xbf16>, vector<2x128xf32> -> vector<2x128xf32>
    %145 = arith.addf %142, %144 : vector<2x128xf32>
    %146 = arith.negf %145 : vector<2x128xf32>
    %147 = math.exp %146 : vector<2x128xf32>
    %cst_24 = arith.constant 1.000000e+00 : f32
    %148 = vector.broadcast %cst_24 : f32 to vector<2x128xf32>
    %149 = arith.addf %148, %147 : vector<2x128xf32>
    %150 = arith.divf %148, %149 : vector<2x128xf32>
    %151 = vector.extract_strided_slice %150 {offsets = [0, 0], sizes = [2, 32], strides = [1, 1]} : vector<2x128xf32> to vector<2x32xf32>
    %152 = vector.extract_strided_slice %150 {offsets = [0, 32], sizes = [2, 32], strides = [1, 1]} : vector<2x128xf32> to vector<2x32xf32>
    %153 = vector.extract_strided_slice %145 {offsets = [0, 64], sizes = [2, 32], strides = [1, 1]} : vector<2x128xf32> to vector<2x32xf32>
    %154 = math.tanh %153 : vector<2x32xf32>
    %155 = vector.extract_strided_slice %150 {offsets = [0, 96], sizes = [2, 32], strides = [1, 1]} : vector<2x128xf32> to vector<2x32xf32>
    %156 = arith.mulf %152, %139 : vector<2x32xf32>
    %157 = arith.mulf %151, %154 : vector<2x32xf32>
    %158 = arith.addf %156, %157 : vector<2x32xf32>
    %159 = math.tanh %158 : vector<2x32xf32>
    %160 = arith.mulf %155, %159 : vector<2x32xf32>
    %161 = tpu.concatenate %27, %46, %65, %84, %103, %122, %141, %160 in 1 : vector<2x32xf32>, vector<2x32xf32>, vector<2x32xf32>, vector<2x32xf32>, vector<2x32xf32>, vector<2x32xf32>, vector<2x32xf32>, vector<2x32xf32> -> vector<2x256xf32>
    %162 = arith.negf %161 : vector<2x256xf32>
    %163 = math.exp %162 : vector<2x256xf32>
    %cst_25 = arith.constant 1.000000e+00 : f32
    %164 = vector.broadcast %cst_25 : f32 to vector<2x256xf32>
    %165 = arith.addf %164, %163 : vector<2x256xf32>
    %166 = arith.divf %164, %165 : vector<2x256xf32>
    %c0_26 = arith.constant 0 : index
    %c0_27 = arith.constant 0 : index
    %167 = vector.load %arg4[%c0_26, %c0_27] : memref<2x256xf32, #tpu.memory_space<vmem>>, vector<2x256xf32>
    tpu.vector_store %arg4[%c0_26, %c0_27], %166 {strides = array<i32>} : memref<2x256xf32, #tpu.memory_space<vmem>>, vector<2x256xf32>,
    return
  }
}

</mosaic_0001>

<llo_original>
// kernel: tpu_custom_call.1
$region0: #{tpu_custom_call.1}
  #allocation0 [shape = 'u32[]', space=smem, size = 0x4, offset = 0x4, fixed_abs, tag = 'smem constant byte address 0x4 - core index']
  #allocation1 [shape = 'u32[144,128]{1,0:T(1,128)}', space=vmem, size = 0x12000, scoped, tag = 'internal scratch']
  %s0 = inlined_call_operand.hbm [shape: bf16[16,16], index: 0, kind: input, shape index: {}]
  %s1 = inlined_call_operand.hbm [shape: bf16[16,128], index: 1, kind: input, shape index: {}]
  %s2 = inlined_call_operand.hbm [shape: bf16[32,128], index: 2, kind: input, shape index: {}]
  %s3 = inlined_call_operand.vmem [shape: f32[1,128], index: 3, kind: input, shape index: {}]
  %s4 = inlined_call_operand.hbm [shape: f32[2,256], index: 4, kind: output, shape index: {}]
  %s5 = sld [smem:[#allocation0]]
  $region38: #{tpu_custom_call.1} parent=0
    _
  %s7 = ssub.s32 1, %s5
  %s8 = scalar_select 0, %s7, %s5
  $region1: #{tpu_custom_call.1} parent=0
    #allocation2 [shape = 'u8[4096]{0}', space=vmem, size = 0x1000, scoped, tag = 'input window, operand 0, single buffered']
    #allocation3 [shape = 's32[1]{0}', space=sflag, size = 0x4, scoped, tag = 'scoped memory for tpu_custom_call.1']
    #allocation4 [shape = 's32[1]{0}', space=sflag, size = 0x4, scoped, tag = 'scoped memory for tpu_custom_call.1']
    #allocation5 [shape = 'u8[4096]{0}', space=vmem, size = 0x1000, scoped, tag = 'input window, operand 1, single buffered']
    #allocation6 [shape = 's32[1]{0}', space=sflag, size = 0x4, scoped, tag = 'scoped memory for tpu_custom_call.1']
    #allocation7 [shape = 'u8[8192]{0}', space=vmem, size = 0x2000, scoped, tag = 'input window, operand 2, single buffered']
    #allocation8 [shape = 'u8[2048]{0}', space=vmem, size = 0x800, scoped, tag = 'output window, operand 0, single buffered']
    %9 = vsyncpa [#allocation3], 0
    %10 = vsyncpa [#allocation6], 0
    %11 = vsyncpa [#allocation4], 0
    // Predicated region
    $region2: #{tpu_custom_call.1} parent=1 // pred_check
      _
    $region3: #{tpu_custom_call.1} parent=1 // pred_check_branch
      %13 = sbr.rel (0) target = $region5
    $region4: #{tpu_custom_call.1} parent=1 // pred_region
      %s15 = ssub.s32 128, 128
      %16 = vsyncadd [#allocation3], %s15
      %s17 = sshll.u32 [#allocation2], 4
      %s18 = int_to_ptr.vmem [resolvable:$true] %s17
      %23 = dma.hbm_to_vmem [thread:$0]  %s0, 128, %s18, [#allocation3], 64, 64, 4
    $region5: #{tpu_custom_call.1} parent=1 // pred_fallthru
      _
    // Predicated region
    $region6: #{tpu_custom_call.1} parent=1 // pred_check
      _
    $region7: #{tpu_custom_call.1} parent=1 // pred_check_branch
      %25 = sbr.rel (0) target = $region9
    $region8: #{tpu_custom_call.1} parent=1 // pred_region
      %s27 = ssub.s32 128, 128
      %28 = vsyncadd [#allocation6], %s27
      %s29 = sshll.u32 [#allocation5], 4
      %s30 = int_to_ptr.vmem [resolvable:$true] %s29
      %35 = dma.hbm_to_vmem [thread:$0]  %s1, 128, %s30, [#allocation6], 64, 64, 4
    $region9: #{tpu_custom_call.1} parent=1 // pred_fallthru
      _
    // Predicated region
    $region10: #{tpu_custom_call.1} parent=1 // pred_check
      _
    $region11: #{tpu_custom_call.1} parent=1 // pred_check_branch
      %37 = sbr.rel (0) target = $region13
    $region12: #{tpu_custom_call.1} parent=1 // pred_region
      %s39 = ssub.s32 256, 256
      %40 = vsyncadd [#allocation6], %s39
      %s41 = sshll.u32 [#allocation7], 4
      %s42 = int_to_ptr.vmem [resolvable:$true] %s41
      %47 = dma.hbm_to_vmem [thread:$0]  %s2, 256, %s42, [#allocation6], 64, 64, 4
    $region13: #{tpu_custom_call.1} parent=1 // pred_fallthru
      _
    // Predicated region
    $region14: #{tpu_custom_call.1} parent=1 // pred_check
      _
    $region15: #{tpu_custom_call.1} parent=1 // pred_check_branch
      %49 = sbr.rel (0) target = $region17
    $region16: #{tpu_custom_call.1} parent=1 // pred_region
      _
    $region17: #{tpu_custom_call.1} parent=1 // pred_fallthru
      _
    // Predicated region
    $region18: #{tpu_custom_call.1} parent=1 // pred_check
      _
    $region19: #{tpu_custom_call.1} parent=1 // pred_check_branch
      %51 = sbr.rel (0) target = $region21
    $region20: #{tpu_custom_call.1} parent=1 // pred_region
      %52 = dma.done [#allocation3], 128
    $region21: #{tpu_custom_call.1} parent=1 // pred_fallthru
      _
    // Predicated region
    $region22: #{tpu_custom_call.1} parent=1 // pred_check
      _
    $region23: #{tpu_custom_call.1} parent=1 // pred_check_branch
      %54 = sbr.rel (0) target = $region25
    $region24: #{tpu_custom_call.1} parent=1 // pred_region
      %55 = dma.done [#allocation6], 128
    $region25: #{tpu_custom_call.1} parent=1 // pred_fallthru
      _
    // Predicated region
    $region26: #{tpu_custom_call.1} parent=1 // pred_check
      _
    $region27: #{tpu_custom_call.1} parent=1 // pred_check_branch
      %57 = sbr.rel (0) target = $region29
    $region28: #{tpu_custom_call.1} parent=1 // pred_region
      %58 = dma.done [#allocation6], 256
    $region29: #{tpu_custom_call.1} parent=1 // pred_fallthru
      _
    %v60 = vld [vmem:[#allocation2] sm:$0xf]
    %v61 = vld [vmem:[#allocation2 + $0x4] sm:$0xf]
    %v62 = vld [vmem:[#allocation5] sm:$0xf]
    %v63 = vld [vmem:[#allocation5 + $0x4] sm:$0xf]
    %v64 = vld [vmem:[%s3] sm:$0x1]
    %v66 = vlaneseq
    %v67 = vshrl.u32 %v66, 7
    %v68 = vsub.s32 0, %v67
    %v69 = vrot.slane %v64, %v68
    %v73 = vunpack.c.l.b16 %v60
    %v74 = vunpack.c.l.b16 %v61
    %v75 = vpack.c.b16 %v74, %v73
    %v78 = vunpack.c.l.b16 %v62
    %v79 = vunpack.c.l.b16 %v63
    %v80 = vpack.c.b16 %v79, %v78
    %vm82 = vcmask 130048
    %v84 = vsel %vm82, %v75, 0
    %86 = vmatprep.subr.bf16.mxu0 0
    %87 = vmatpush1.bf16.msra.mxu0 0
    %88 = vmatprep.subr.bf16.mxu0 0
    %89 = vmatpush1.bf16.msra.mxu0 0
    %90 = vmatprep.subr.bf16.mxu0 0
    %91 = vmatpush1.bf16.msra.mxu0 0
    %92 = vmatprep.subr.bf16.mxu0 0
    %93 = vmatpush1.bf16.msra.mxu0 0
    %94 = vmatprep.subr.bf16.mxu0 0
    %95 = vmatpush1.bf16.msra.mxu0 0
    %96 = vmatprep.subr.bf16.mxu0 0
    %97 = vmatpush1.bf16.msra.mxu0 0
    %98 = vmatprep.subr.bf16.mxu0 0
    %99 = vmatpush1.bf16.msra.mxu0 0
    %100 = vmatprep.subr.bf16.mxu0 0
    %101 = vmatpush1.bf16.msra.mxu0 %v80
    %102 = vmatprep.subr.bf16.mxu0 0
    %103 = vmatpush2.bf16.msra.mxu0 0
    %104 = vmatprep.subr.bf16.mxu0 0
    %105 = vmatpush2.bf16.msra.mxu0 0
    %106 = vmatprep.subr.bf16.mxu0 0
    %107 = vmatpush2.bf16.msra.mxu0 0
    %108 = vmatprep.subr.bf16.mxu0 0
    %109 = vmatpush2.bf16.msra.mxu0 0
    %110 = vmatprep.subr.bf16.mxu0 0
    %111 = vmatpush2.bf16.msra.mxu0 0
    %112 = vmatprep.subr.bf16.mxu0 0
    %113 = vmatpush2.bf16.msra.mxu0 0
    %114 = vmatprep.subr.bf16.mxu0 0
    %115 = vmatpush2.bf16.msra.mxu0 0
    %116 = vmatprep.subr.bf16.mxu0 0
    %117 = vmatpush2.bf16.msra.mxu0 0
    %118 = vmatprep.mubr.bf16.mxu0 0
    %119 = vmatmul.mubr.bf16.gmra.mxu0 %v84
    %v120 = vpop.f32.mrf.mxu0
    %v121 = vadd.f32 %v69, %v120
    %v122 = vpop.f32.mrf.mxu0
    %v123 = vpop.f32.mrf.mxu0
    %v124 = vadd.f32 %v69, %v123
    %v125 = vpop.f32.mrf.mxu0
    %126 = vdwg.mxu0
    %v127 = vld [vmem:[#allocation7] sm:$0xf]
    %v128 = vld [vmem:[#allocation7 + $0x4] sm:$0xf]
    %v129 = vld [vmem:[#allocation7 + $0x8] sm:$0xf]
    %v130 = vld [vmem:[#allocation7 + $0xc] sm:$0xf]
    %v135 = vunpack.c.l.b16 %v127
    %v136 = vunpack.c.l.b16 %v128
    %v137 = vunpack.c.l.b16 %v129
    %v138 = vunpack.c.l.b16 %v130
    %v139 = vpack.c.b16 %v136, %v135
    %v140 = vpack.c.b16 %v138, %v137
    %vm143 = vcmask 261120
    %v145 = vsel %vm143, 0, 0
    %147 = vmatprep.subr.bf16.mxu0 0
    %148 = vmatpush1.bf16.msra.mxu0 0
    %149 = vmatprep.subr.bf16.mxu0 0
    %150 = vmatpush1.bf16.msra.mxu0 0
    %151 = vmatprep.subr.bf16.mxu0 0
    %152 = vmatpush1.bf16.msra.mxu0 0
    %153 = vmatprep.subr.bf16.mxu0 0
    %154 = vmatpush1.bf16.msra.mxu0 0
    %155 = vmatprep.subr.bf16.mxu0 0
    %156 = vmatpush1.bf16.msra.mxu0 0
    %157 = vmatprep.subr.bf16.mxu0 0
    %158 = vmatpush1.bf16.msra.mxu0 0
    %159 = vmatprep.subr.bf16.mxu0 0
    %160 = vmatpush1.bf16.msra.mxu0 %v140
    %161 = vmatprep.subr.bf16.mxu0 0
    %162 = vmatpush1.bf16.msra.mxu0 %v139
    %163 = vmatprep.subr.bf16.mxu0 0
    %164 = vmatpush2.bf16.msra.mxu0 0
    %165 = vmatprep.subr.bf16.mxu0 0
    %166 = vmatpush2.bf16.msra.mxu0 0
    %167 = vmatprep.subr.bf16.mxu0 0
    %168 = vmatpush2.bf16.msra.mxu0 0
    %169 = vmatprep.subr.bf16.mxu0 0
    %170 = vmatpush2.bf16.msra.mxu0 0
    %171 = vmatprep.subr.bf16.mxu0 0
    %172 = vmatpush2.bf16.msra.mxu0 0
    %173 = vmatprep.subr.bf16.mxu0 0
    %174 = vmatpush2.bf16.msra.mxu0 0
    %175 = vmatprep.subr.bf16.mxu0 0
    %176 = vmatpush2.bf16.msra.mxu0 0
    %177 = vmatprep.subr.bf16.mxu0 0
    %178 = vmatpush2.bf16.msra.mxu0 0
    %179 = vmatprep.mubr.bf16.mxu0 0
    %180 = vmatmul.mubr.bf16.gmra.mxu0 %v145
    %v181 = vpop.f32.mrf.mxu0
    %v182 = vadd.f32 0.0, %v181
    %v183 = vpop.f32.mrf.mxu0
    %v184 = vpop.f32.mrf.mxu0
    %v185 = vpop.f32.mrf.mxu0
    %186 = vdwg.mxu0
    %v187 = vadd.f32 %v121, %v182
    %v188 = vxor.u32 %v187, 2147483648
    %v189 = vmul.f32 %v188, 1.442695
    %v190 = vpow.pop %v189
    %v191 = vadd.f32 %v190, 1.0
    %v192 = vrcp.pop %v191
    %v193 = vmul.f32 1.0, %v192
    %v194 = vtanh.pop %v187
    %v195 = vmul.f32 %v193, 0.0
    %197 = vrot.lane.b32.xlu0 %v194, 64
    %v198 = vpop.permute.xlu0 %197
    %v200 = vmul.f32 %v193, %v198
    %202 = vrot.lane.b32.xlu0 %v200, 32
    %v203 = vpop.permute.xlu0 %202
    %v205 = vadd.f32 %v195, %v203
    %v206 = vtanh.pop %v205
    %208 = vrot.lane.b32.xlu0 %v206, 64
    %v209 = vpop.permute.xlu0 %208
    %v211 = vmul.f32 %v193, %v209
    %v212 = vpack.c.bf16 %v211, %v211
    %214 = vrot.lane.b32.xlu0 %v212, 32
    %v215 = vpop.permute.xlu0 %214
    %v217 = vsel %vm143, %v215, 0
    %219 = vmatprep.subr.bf16.mxu0 0
    %220 = vmatpush1.bf16.msra.mxu0 0
    %221 = vmatprep.subr.bf16.mxu0 0
    %222 = vmatpush1.bf16.msra.mxu0 0
    %223 = vmatprep.subr.bf16.mxu0 0
    %224 = vmatpush1.bf16.msra.mxu0 0
    %225 = vmatprep.subr.bf16.mxu0 0
    %226 = vmatpush1.bf16.msra.mxu0 0
    %227 = vmatprep.subr.bf16.mxu0 0
    %228 = vmatpush1.bf16.msra.mxu0 0
    %229 = vmatprep.subr.bf16.mxu0 0
    %230 = vmatpush1.bf16.msra.mxu0 0
    %231 = vmatprep.subr.bf16.mxu0 0
    %232 = vmatpush1.bf16.msra.mxu0 %v140
    %233 = vmatprep.subr.bf16.mxu0 0
    %234 = vmatpush1.bf16.msra.mxu0 %v139
    %235 = vmatprep.subr.bf16.mxu0 0
    %236 = vmatpush2.bf16.msra.mxu0 0
    %237 = vmatprep.subr.bf16.mxu0 0
    %238 = vmatpush2.bf16.msra.mxu0 0
    %239 = vmatprep.subr.bf16.mxu0 0
    %240 = vmatpush2.bf16.msra.mxu0 0
    %241 = vmatprep.subr.bf16.mxu0 0
    %242 = vmatpush2.bf16.msra.mxu0 0
    %243 = vmatprep.subr.bf16.mxu0 0
    %244 = vmatpush2.bf16.msra.mxu0 0
    %245 = vmatprep.subr.bf16.mxu0 0
    %246 = vmatpush2.bf16.msra.mxu0 0
    %247 = vmatprep.subr.bf16.mxu0 0
    %248 = vmatpush2.bf16.msra.mxu0 0
    %249 = vmatprep.subr.bf16.mxu0 0
    %250 = vmatpush2.bf16.msra.mxu0 0
    %251 = vmatprep.mubr.bf16.mxu0 0
    %252 = vmatmul.mubr.bf16.gmra.mxu0 %v217
    %v253 = vpop.f32.mrf.mxu0
    %v254 = vadd.f32 0.0, %v253
    %v255 = vpop.f32.mrf.mxu0
    %v256 = vpop.f32.mrf.mxu0
    %v257 = vpop.f32.mrf.mxu0
    %258 = vdwg.mxu0
    %v260 = vrot.slane %v254, 6
    %v262 = vadd.f32 %v121, %v260
    %v263 = vxor.u32 %v262, 2147483648
    %v264 = vmul.f32 %v263, 1.442695
    %v265 = vpow.pop %v264
    %v266 = vadd.f32 %v265, 1.0
    %v267 = vrcp.pop %v266
    %v268 = vmul.f32 1.0, %v267
    %v269 = vtanh.pop %v262
    %v271 = vrot.slane %v205, 6
    %v273 = vmul.f32 %v268, %v271
    %275 = vrot.lane.b32.xlu0 %v269, 64
    %v276 = vpop.permute.xlu0 %275
    %v278 = vmul.f32 %v268, %v276
    %280 = vrot.lane.b32.xlu0 %v278, 32
    %v281 = vpop.permute.xlu0 %280
    %v283 = vadd.f32 %v273, %v281
    %v284 = vtanh.pop %v283
    %286 = vrot.lane.b32.xlu0 %v284, 64
    %v287 = vpop.permute.xlu0 %286
    %v289 = vmul.f32 %v268, %v287
    %v290 = vpack.c.bf16 %v289, %v289
    %v292 = vrot.slane %v290, 1
    %293 = vrot.lane.b32.xlu0 %v292, 32
    %v294 = vpop.permute.xlu0 %293
    %v296 = vsel %vm143, %v294, 0
    %298 = vmatprep.subr.bf16.mxu0 0
    %299 = vmatpush1.bf16.msra.mxu0 0
    %300 = vmatprep.subr.bf16.mxu0 0
    %301 = vmatpush1.bf16.msra.mxu0 0
    %302 = vmatprep.subr.bf16.mxu0 0
    %303 = vmatpush1.bf16.msra.mxu0 0
    %304 = vmatprep.subr.bf16.mxu0 0
    %305 = vmatpush1.bf16.msra.mxu0 0
    %306 = vmatprep.subr.bf16.mxu0 0
    %307 = vmatpush1.bf16.msra.mxu0 0
    %308 = vmatprep.subr.bf16.mxu0 0
    %309 = vmatpush1.bf16.msra.mxu0 0
    %310 = vmatprep.subr.bf16.mxu0 0
    %311 = vmatpush1.bf16.msra.mxu0 %v140
    %312 = vmatprep.subr.bf16.mxu0 0
    %313 = vmatpush1.bf16.msra.mxu0 %v139
    %314 = vmatprep.subr.bf16.mxu0 0
    %315 = vmatpush2.bf16.msra.mxu0 0
    %316 = vmatprep.subr.bf16.mxu0 0
    %317 = vmatpush2.bf16.msra.mxu0 0
    %318 = vmatprep.subr.bf16.mxu0 0
    %319 = vmatpush2.bf16.msra.mxu0 0
    %320 = vmatprep.subr.bf16.mxu0 0
    %321 = vmatpush2.bf16.msra.mxu0 0
    %322 = vmatprep.subr.bf16.mxu0 0
    %323 = vmatpush2.bf16.msra.mxu0 0
    %324 = vmatprep.subr.bf16.mxu0 0
    %325 = vmatpush2.bf16.msra.mxu0 0
    %326 = vmatprep.subr.bf16.mxu0 0
    %327 = vmatpush2.bf16.msra.mxu0 0
    %328 = vmatprep.subr.bf16.mxu0 0
    %329 = vmatpush2.bf16.msra.mxu0 0
    %330 = vmatprep.mubr.bf16.mxu0 0
    %331 = vmatmul.mubr.bf16.gmra.mxu0 %v296
    %v332 = vpop.f32.mrf.mxu0
    %v333 = vadd.f32 0.0, %v332
    %v334 = vpop.f32.mrf.mxu0
    %v335 = vpop.f32.mrf.mxu0
    %v336 = vpop.f32.mrf.mxu0
    %337 = vdwg.mxu0
    %v339 = vrot.slane %v333, 4
    %v341 = vadd.f32 %v121, %v339
    %v342 = vxor.u32 %v341, 2147483648
    %v343 = vmul.f32 %v342, 1.442695
    %v344 = vpow.pop %v343
    %v345 = vadd.f32 %v344, 1.0
    %v346 = vrcp.pop %v345
    %v347 = vmul.f32 1.0, %v346
    %v348 = vtanh.pop %v341
    %v350 = vrot.slane %v283, 6
    %v352 = vmul.f32 %v347, %v350
    %354 = vrot.lane.b32.xlu0 %v348, 64
    %v355 = vpop.permute.xlu0 %354
    %v357 = vmul.f32 %v347, %v355
    %359 = vrot.lane.b32.xlu0 %v357, 32
    %v360 = vpop.permute.xlu0 %359
    %v362 = vadd.f32 %v352, %v360
    %v363 = vtanh.pop %v362
    %365 = vrot.lane.b32.xlu0 %v363, 64
    %v366 = vpop.permute.xlu0 %365
    %v368 = vmul.f32 %v347, %v366
    %v369 = vpack.c.bf16 %v368, %v368
    %v371 = vrot.slane %v369, 2
    %372 = vrot.lane.b32.xlu0 %v371, 32
    %v373 = vpop.permute.xlu0 %372
    %v375 = vsel %vm143, %v373, 0
    %377 = vmatprep.subr.bf16.mxu0 0
    %378 = vmatpush1.bf16.msra.mxu0 0
    %379 = vmatprep.subr.bf16.mxu0 0
    %380 = vmatpush1.bf16.msra.mxu0 0
    %381 = vmatprep.subr.bf16.mxu0 0
    %382 = vmatpush1.bf16.msra.mxu0 0
    %383 = vmatprep.subr.bf16.mxu0 0
    %384 = vmatpush1.bf16.msra.mxu0 0
    %385 = vmatprep.subr.bf16.mxu0 0
    %386 = vmatpush1.bf16.msra.mxu0 0
    %387 = vmatprep.subr.bf16.mxu0 0
    %388 = vmatpush1.bf16.msra.mxu0 0
    %389 = vmatprep.subr.bf16.mxu0 0
    %390 = vmatpush1.bf16.msra.mxu0 %v140
    %391 = vmatprep.subr.bf16.mxu0 0
    %392 = vmatpush1.bf16.msra.mxu0 %v139
    %393 = vmatprep.subr.bf16.mxu0 0
    %394 = vmatpush2.bf16.msra.mxu0 0
    %395 = vmatprep.subr.bf16.mxu0 0
    %396 = vmatpush2.bf16.msra.mxu0 0
    %397 = vmatprep.subr.bf16.mxu0 0
    %398 = vmatpush2.bf16.msra.mxu0 0
    %399 = vmatprep.subr.bf16.mxu0 0
    %400 = vmatpush2.bf16.msra.mxu0 0
    %401 = vmatprep.subr.bf16.mxu0 0
    %402 = vmatpush2.bf16.msra.mxu0 0
    %403 = vmatprep.subr.bf16.mxu0 0
    %404 = vmatpush2.bf16.msra.mxu0 0
    %405 = vmatprep.subr.bf16.mxu0 0
    %406 = vmatpush2.bf16.msra.mxu0 0
    %407 = vmatprep.subr.bf16.mxu0 0
    %408 = vmatpush2.bf16.msra.mxu0 0
    %409 = vmatprep.mubr.bf16.mxu0 0
    %410 = vmatmul.mubr.bf16.gmra.mxu0 %v375
    %v411 = vpop.f32.mrf.mxu0
    %v412 = vadd.f32 0.0, %v411
    %v413 = vpop.f32.mrf.mxu0
    %v414 = vpop.f32.mrf.mxu0
    %v415 = vpop.f32.mrf.mxu0
    %416 = vdwg.mxu0
    %v418 = vrot.slane %v412, 2
    %v420 = vadd.f32 %v121, %v418
    %v421 = vxor.u32 %v420, 2147483648
    %v422 = vmul.f32 %v421, 1.442695
    %v423 = vpow.pop %v422
    %v424 = vadd.f32 %v423, 1.0
    %v425 = vrcp.pop %v424
    %v426 = vmul.f32 1.0, %v425
    %v427 = vtanh.pop %v420
    %v429 = vrot.slane %v362, 6
    %v431 = vmul.f32 %v426, %v429
    %433 = vrot.lane.b32.xlu0 %v427, 64
    %v434 = vpop.permute.xlu0 %433
    %v436 = vmul.f32 %v426, %v434
    %438 = vrot.lane.b32.xlu0 %v436, 32
    %v439 = vpop.permute.xlu0 %438
    %v441 = vadd.f32 %v431, %v439
    %v442 = vtanh.pop %v441
    %444 = vrot.lane.b32.xlu0 %v442, 64
    %v445 = vpop.permute.xlu0 %444
    %v447 = vmul.f32 %v426, %v445
    %v448 = vpack.c.bf16 %v447, %v447
    %v450 = vrot.slane %v448, 3
    %451 = vrot.lane.b32.xlu0 %v450, 32
    %v452 = vpop.permute.xlu0 %451
    %v454 = vsel %vm143, %v452, 0
    %456 = vmatprep.subr.bf16.mxu0 0
    %457 = vmatpush1.bf16.msra.mxu0 0
    %458 = vmatprep.subr.bf16.mxu0 0
    %459 = vmatpush1.bf16.msra.mxu0 0
    %460 = vmatprep.subr.bf16.mxu0 0
    %461 = vmatpush1.bf16.msra.mxu0 0
    %462 = vmatprep.subr.bf16.mxu0 0
    %463 = vmatpush1.bf16.msra.mxu0 0
    %464 = vmatprep.subr.bf16.mxu0 0
    %465 = vmatpush1.bf16.msra.mxu0 0
    %466 = vmatprep.subr.bf16.mxu0 0
    %467 = vmatpush1.bf16.msra.mxu0 0
    %468 = vmatprep.subr.bf16.mxu0 0
    %469 = vmatpush1.bf16.msra.mxu0 %v140
    %470 = vmatprep.subr.bf16.mxu0 0
    %471 = vmatpush1.bf16.msra.mxu0 %v139
    %472 = vmatprep.subr.bf16.mxu0 0
    %473 = vmatpush2.bf16.msra.mxu0 0
    %474 = vmatprep.subr.bf16.mxu0 0
    %475 = vmatpush2.bf16.msra.mxu0 0
    %476 = vmatprep.subr.bf16.mxu0 0
    %477 = vmatpush2.bf16.msra.mxu0 0
    %478 = vmatprep.subr.bf16.mxu0 0
    %479 = vmatpush2.bf16.msra.mxu0 0
    %480 = vmatprep.subr.bf16.mxu0 0
    %481 = vmatpush2.bf16.msra.mxu0 0
    %482 = vmatprep.subr.bf16.mxu0 0
    %483 = vmatpush2.bf16.msra.mxu0 0
    %484 = vmatprep.subr.bf16.mxu0 0
    %485 = vmatpush2.bf16.msra.mxu0 0
    %486 = vmatprep.subr.bf16.mxu0 0
    %487 = vmatpush2.bf16.msra.mxu0 0
    %488 = vmatprep.mubr.bf16.mxu0 0
    %489 = vmatmul.mubr.bf16.gmra.mxu0 %v454
    %v490 = vpop.f32.mrf.mxu0
    %v491 = vadd.f32 0.0, %v490
    %v492 = vpop.f32.mrf.mxu0
    %v493 = vpop.f32.mrf.mxu0
    %v494 = vpop.f32.mrf.mxu0
    %495 = vdwg.mxu0
    %v496 = vadd.f32 %v124, %v491
    %v497 = vxor.u32 %v496, 2147483648
    %v498 = vmul.f32 %v497, 1.442695
    %v499 = vpow.pop %v498
    %v500 = vadd.f32 %v499, 1.0
    %v501 = vrcp.pop %v500
    %v502 = vmul.f32 1.0, %v501
    %v503 = vtanh.pop %v496
    %v505 = vrot.slane %v441, 6
    %v507 = vmul.f32 %v502, %v505
    %509 = vrot.lane.b32.xlu0 %v503, 64
    %v510 = vpop.permute.xlu0 %509
    %v512 = vmul.f32 %v502, %v510
    %514 = vrot.lane.b32.xlu0 %v512, 32
    %v515 = vpop.permute.xlu0 %514
    %v517 = vadd.f32 %v507, %v515
    %v518 = vtanh.pop %v517
    %520 = vrot.lane.b32.xlu0 %v518, 64
    %v521 = vpop.permute.xlu0 %520
    %v523 = vmul.f32 %v502, %v521
    %v524 = vpack.c.bf16 %v523, %v523
    %526 = vrot.lane.b32.xlu0 %v524, 32
    %v527 = vpop.permute.xlu0 %526
    %v529 = vsel %vm143, %v527, 0
    %531 = vmatprep.subr.bf16.mxu0 0
    %532 = vmatpush1.bf16.msra.mxu0 0
    %533 = vmatprep.subr.bf16.mxu0 0
    %534 = vmatpush1.bf16.msra.mxu0 0
    %535 = vmatprep.subr.bf16.mxu0 0
    %536 = vmatpush1.bf16.msra.mxu0 0
    %537 = vmatprep.subr.bf16.mxu0 0
    %538 = vmatpush1.bf16.msra.mxu0 0
    %539 = vmatprep.subr.bf16.mxu0 0
    %540 = vmatpush1.bf16.msra.mxu0 0
    %541 = vmatprep.subr.bf16.mxu0 0
    %542 = vmatpush1.bf16.msra.mxu0 0
    %543 = vmatprep.subr.bf16.mxu0 0
    %544 = vmatpush1.bf16.msra.mxu0 %v140
    %545 = vmatprep.subr.bf16.mxu0 0
    %546 = vmatpush1.bf16.msra.mxu0 %v139
    %547 = vmatprep.subr.bf16.mxu0 0
    %548 = vmatpush2.bf16.msra.mxu0 0
    %549 = vmatprep.subr.bf16.mxu0 0
    %550 = vmatpush2.bf16.msra.mxu0 0
    %551 = vmatprep.subr.bf16.mxu0 0
    %552 = vmatpush2.bf16.msra.mxu0 0
    %553 = vmatprep.subr.bf16.mxu0 0
    %554 = vmatpush2.bf16.msra.mxu0 0
    %555 = vmatprep.subr.bf16.mxu0 0
    %556 = vmatpush2.bf16.msra.mxu0 0
    %557 = vmatprep.subr.bf16.mxu0 0
    %558 = vmatpush2.bf16.msra.mxu0 0
    %559 = vmatprep.subr.bf16.mxu0 0
    %560 = vmatpush2.bf16.msra.mxu0 0
    %561 = vmatprep.subr.bf16.mxu0 0
    %562 = vmatpush2.bf16.msra.mxu0 0
    %563 = vmatprep.mubr.bf16.mxu0 0
    %564 = vmatmul.mubr.bf16.gmra.mxu0 %v529
    %v565 = vpop.f32.mrf.mxu0
    %v566 = vadd.f32 0.0, %v565
    %v567 = vpop.f32.mrf.mxu0
    %v568 = vpop.f32.mrf.mxu0
    %v569 = vpop.f32.mrf.mxu0
    %570 = vdwg.mxu0
    %v572 = vrot.slane %v566, 6
    %v574 = vadd.f32 %v124, %v572
    %v575 = vxor.u32 %v574, 2147483648
    %v576 = vmul.f32 %v575, 1.442695
    %v577 = vpow.pop %v576
    %v578 = vadd.f32 %v577, 1.0
    %v579 = vrcp.pop %v578
    %v580 = vmul.f32 1.0, %v579
    %v581 = vtanh.pop %v574
    %v583 = vrot.slane %v517, 6
    %v585 = vmul.f32 %v580, %v583
    %587 = vrot.lane.b32.xlu0 %v581, 64
    %v588 = vpop.permute.xlu0 %587
    %v590 = vmul.f32 %v580, %v588
    %592 = vrot.lane.b32.xlu0 %v590, 32
    %v593 = vpop.permute.xlu0 %592
    %v595 = vadd.f32 %v585, %v593
    %v596 = vtanh.pop %v595
    %598 = vrot.lane.b32.xlu0 %v596, 64
    %v599 = vpop.permute.xlu0 %598
    %v601 = vmul.f32 %v580, %v599
    %v602 = vpack.c.bf16 %v601, %v601
    %v604 = vrot.slane %v602, 1
    %605 = vrot.lane.b32.xlu0 %v604, 32
    %v606 = vpop.permute.xlu0 %605
    %v608 = vsel %vm143, %v606, 0
    %610 = vmatprep.subr.bf16.mxu0 0
    %611 = vmatpush1.bf16.msra.mxu0 0
    %612 = vmatprep.subr.bf16.mxu0 0
    %613 = vmatpush1.bf16.msra.mxu0 0
    %614 = vmatprep.subr.bf16.mxu0 0
    %615 = vmatpush1.bf16.msra.mxu0 0
    %616 = vmatprep.subr.bf16.mxu0 0
    %617 = vmatpush1.bf16.msra.mxu0 0
    %618 = vmatprep.subr.bf16.mxu0 0
    %619 = vmatpush1.bf16.msra.mxu0 0
    %620 = vmatprep.subr.bf16.mxu0 0
    %621 = vmatpush1.bf16.msra.mxu0 0
    %622 = vmatprep.subr.bf16.mxu0 0
    %623 = vmatpush1.bf16.msra.mxu0 %v140
    %624 = vmatprep.subr.bf16.mxu0 0
    %625 = vmatpush1.bf16.msra.mxu0 %v139
    %626 = vmatprep.subr.bf16.mxu0 0
    %627 = vmatpush2.bf16.msra.mxu0 0
    %628 = vmatprep.subr.bf16.mxu0 0
    %629 = vmatpush2.bf16.msra.mxu0 0
    %630 = vmatprep.subr.bf16.mxu0 0
    %631 = vmatpush2.bf16.msra.mxu0 0
    %632 = vmatprep.subr.bf16.mxu0 0
    %633 = vmatpush2.bf16.msra.mxu0 0
    %634 = vmatprep.subr.bf16.mxu0 0
    %635 = vmatpush2.bf16.msra.mxu0 0
    %636 = vmatprep.subr.bf16.mxu0 0
    %637 = vmatpush2.bf16.msra.mxu0 0
    %638 = vmatprep.subr.bf16.mxu0 0
    %639 = vmatpush2.bf16.msra.mxu0 0
    %640 = vmatprep.subr.bf16.mxu0 0
    %641 = vmatpush2.bf16.msra.mxu0 0
    %642 = vmatprep.mubr.bf16.mxu0 0
    %643 = vmatmul.mubr.bf16.gmra.mxu0 %v608
    %v644 = vpop.f32.mrf.mxu0
    %v645 = vadd.f32 0.0, %v644
    %v646 = vpop.f32.mrf.mxu0
    %v647 = vpop.f32.mrf.mxu0
    %v648 = vpop.f32.mrf.mxu0
    %649 = vdwg.mxu0
    %v651 = vrot.slane %v645, 4
    %v653 = vadd.f32 %v124, %v651
    %v654 = vxor.u32 %v653, 2147483648
    %v655 = vmul.f32 %v654, 1.442695
    %v656 = vpow.pop %v655
    %v657 = vadd.f32 %v656, 1.0
    %v658 = vrcp.pop %v657
    %v659 = vmul.f32 1.0, %v658
    %v660 = vtanh.pop %v653
    %v662 = vrot.slane %v595, 6
    %v664 = vmul.f32 %v659, %v662
    %666 = vrot.lane.b32.xlu0 %v660, 64
    %v667 = vpop.permute.xlu0 %666
    %v669 = vmul.f32 %v659, %v667
    %671 = vrot.lane.b32.xlu0 %v669, 32
    %v672 = vpop.permute.xlu0 %671
    %v674 = vadd.f32 %v664, %v672
    %v675 = vtanh.pop %v674
    %677 = vrot.lane.b32.xlu0 %v675, 64
    %v678 = vpop.permute.xlu0 %677
    %v680 = vmul.f32 %v659, %v678
    %v681 = vpack.c.bf16 %v680, %v680
    %v683 = vrot.slane %v681, 2
    %684 = vrot.lane.b32.xlu0 %v683, 32
    %v685 = vpop.permute.xlu0 %684
    %v687 = vsel %vm143, %v685, 0
    %689 = vmatprep.subr.bf16.mxu0 0
    %690 = vmatpush1.bf16.msra.mxu0 0
    %691 = vmatprep.subr.bf16.mxu0 0
    %692 = vmatpush1.bf16.msra.mxu0 0
    %693 = vmatprep.subr.bf16.mxu0 0
    %694 = vmatpush1.bf16.msra.mxu0 0
    %695 = vmatprep.subr.bf16.mxu0 0
    %696 = vmatpush1.bf16.msra.mxu0 0
    %697 = vmatprep.subr.bf16.mxu0 0
    %698 = vmatpush1.bf16.msra.mxu0 0
    %699 = vmatprep.subr.bf16.mxu0 0
    %700 = vmatpush1.bf16.msra.mxu0 0
    %701 = vmatprep.subr.bf16.mxu0 0
    %702 = vmatpush1.bf16.msra.mxu0 %v140
    %703 = vmatprep.subr.bf16.mxu0 0
    %704 = vmatpush1.bf16.msra.mxu0 %v139
    %705 = vmatprep.subr.bf16.mxu0 0
    %706 = vmatpush2.bf16.msra.mxu0 0
    %707 = vmatprep.subr.bf16.mxu0 0
    %708 = vmatpush2.bf16.msra.mxu0 0
    %709 = vmatprep.subr.bf16.mxu0 0
    %710 = vmatpush2.bf16.msra.mxu0 0
    %711 = vmatprep.subr.bf16.mxu0 0
    %712 = vmatpush2.bf16.msra.mxu0 0
    %713 = vmatprep.subr.bf16.mxu0 0
    %714 = vmatpush2.bf16.msra.mxu0 0
    %715 = vmatprep.subr.bf16.mxu0 0
    %716 = vmatpush2.bf16.msra.mxu0 0
    %717 = vmatprep.subr.bf16.mxu0 0
    %718 = vmatpush2.bf16.msra.mxu0 0
    %719 = vmatprep.subr.bf16.mxu0 0
    %720 = vmatpush2.bf16.msra.mxu0 0
    %721 = vmatprep.mubr.bf16.mxu0 0
    %722 = vmatmul.mubr.bf16.gmra.mxu0 %v687
    %v723 = vpop.f32.mrf.mxu0
    %v724 = vadd.f32 0.0, %v723
    %v725 = vpop.f32.mrf.mxu0
    %v726 = vpop.f32.mrf.mxu0
    %v727 = vpop.f32.mrf.mxu0
    %728 = vdwg.mxu0
    %v730 = vrot.slane %v724, 2
    %v732 = vadd.f32 %v124, %v730
    %v733 = vxor.u32 %v732, 2147483648
    %v734 = vmul.f32 %v733, 1.442695
    %v735 = vpow.pop %v734
    %v736 = vadd.f32 %v735, 1.0
    %v737 = vrcp.pop %v736
    %v738 = vmul.f32 1.0, %v737
    %v739 = vtanh.pop %v732
    %v741 = vrot.slane %v674, 6
    %v743 = vmul.f32 %v738, %v741
    %745 = vrot.lane.b32.xlu0 %v739, 64
    %v746 = vpop.permute.xlu0 %745
    %v748 = vmul.f32 %v738, %v746
    %750 = vrot.lane.b32.xlu0 %v748, 32
    %v751 = vpop.permute.xlu0 %750
    %v753 = vadd.f32 %v743, %v751
    %v754 = vtanh.pop %v753
    %756 = vrot.lane.b32.xlu0 %v754, 64
    %v757 = vpop.permute.xlu0 %756
    %v759 = vmul.f32 %v738, %v757
    %761 = vrot.lane.b32.xlu0 %v211, 32
    %v762 = vpop.permute.xlu0 %761
    %v765 = vrot.slane %v289, 2
    %766 = vrot.lane.b32.xlu0 %v765, 64
    %v767 = vpop.permute.xlu0 %766
    %v770 = vrot.slane %v368, 4
    %771 = vrot.lane.b32.xlu0 %v770, 96
    %v772 = vpop.permute.xlu0 %771
    %v775 = vrot.slane %v447, 6
    %778 = vrot.lane.b32.xlu0 %v523, 32
    %v779 = vpop.permute.xlu0 %778
    %v782 = vrot.slane %v601, 2
    %783 = vrot.lane.b32.xlu0 %v782, 64
    %v784 = vpop.permute.xlu0 %783
    %v787 = vrot.slane %v680, 4
    %788 = vrot.lane.b32.xlu0 %v787, 96
    %v789 = vpop.permute.xlu0 %788
    %v792 = vrot.slane %v759, 6
    %v794 = vsel %vm143, %v762, %v767
    %vm795 = vcmask 523264
    %v796 = vsel %vm795, %v794, %v772
    %vm797 = vcmask 785408
    %v798 = vsel %vm797, %v796, %v775
    %v799 = vsel %vm143, %v779, %v784
    %v800 = vsel %vm795, %v799, %v789
    %v801 = vsel %vm797, %v800, %v792
    %v802 = vxor.u32 %v798, 2147483648
    %v803 = vxor.u32 %v801, 2147483648
    %v804 = vmul.f32 %v802, 1.442695
    %v805 = vpow.pop %v804
    %v806 = vmul.f32 %v803, 1.442695
    %v807 = vpow.pop %v806
    %v808 = vadd.f32 %v805, 1.0
    %v809 = vadd.f32 %v807, 1.0
    %v810 = vrcp.pop %v808
    %v811 = vmul.f32 1.0, %v810
    %v812 = vrcp.pop %v809
    %v813 = vmul.f32 1.0, %v812
    %v816 = vcombine.low %v811, %v813
    %v818 = vunpack.c.l.s4 1983009808
    %v819 = vunpack.c.0.s8 %v818
    %v820 = vlaneseq
    %v821 = vshrl.u32 %v820, 7
    %v822 = vsub.s32 %v819, %v821
    %v823 = vrot.slane %v816, %v822
    %825 = vst [vmem:[#allocation8] sm:$0xf] %v823
    // Predicated region
    $region30: #{tpu_custom_call.1} parent=1 // pred_check
      _
    $region31: #{tpu_custom_call.1} parent=1 // pred_check_branch
      %827 = sbr.rel (0) target = $region33
    $region32: #{tpu_custom_call.1} parent=1 // pred_region
      %s829 = ssub.s32 64, 64
      %830 = vsyncadd [#allocation4], %s829
      %s832 = sshll.u32 [#allocation8], 4
      %s833 = int_to_ptr.vmem [resolvable:$true] %s832
      %835 = dma.vmem_to_hbm [thread:$0]  %s833, 64, %s4, [#allocation4]
    $region33: #{tpu_custom_call.1} parent=1 // pred_fallthru
      _
    // Predicated region
    $region34: #{tpu_custom_call.1} parent=1 // pred_check
      _
    $region35: #{tpu_custom_call.1} parent=1 // pred_check_branch
      %837 = sbr.rel (0) target = $region37
    $region36: #{tpu_custom_call.1} parent=1 // pred_region
      %838 = dma.done [#allocation4], 64
    $region37: #{tpu_custom_call.1} parent=1 // pred_fallthru
      _
    %839 = vsyncpa [#allocation3], 1
    %840 = vsyncpa [#allocation6], 1
    %841 = vsyncpa [#allocation4], 1

</llo_original>
